<compile_context>
chip_gen: v5e
topology: v5e:2x2
jax: 0.10.0
libtpu: 0.0.40
codegen_flags: <defaults>
</compile_context>

<pallas_src>
import functools

import jax
import jax.numpy as jnp
from jax.experimental import pallas as pl
from jax.experimental.pallas import tpu as pltpu


_LANE = 128        # TPU lane width
_SUBLANE = 8       # f32 sublanes per vreg
_MAX_ROWS = 512    # (sublane) rows per grid step -> 512*128 = 65536 boxes/step


# ----------------------------------------------------------------------------
# Pallas kernel: fused IoU / GIoU loss, elementwise over boxes
# ----------------------------------------------------------------------------

def _iou_loss_kernel(boxes_ref, o_ref, *, loss_type):
    b = boxes_ref[...]                                   # (8, R, 128) f32
    px, py, pw, ph = b[0], b[1], b[2], b[3]              # each (R, 128)
    tx, ty, tw, th = b[4], b[5], b[6], b[7]

    # half extents (computed once)
    phw, phh = 0.5 * pw, 0.5 * ph
    thw, thh = 0.5 * tw, 0.5 * th

    # corners of pred / target boxes (cx, cy, w, h format)
    p_x1, p_y1 = px - phw, py - phh
    p_x2, p_y2 = px + phw, py + phh
    t_x1, t_y1 = tx - thw, ty - thh
    t_x2, t_y2 = tx + thw, ty + thh

    # intersection
    tl_x = jnp.maximum(p_x1, t_x1)
    tl_y = jnp.maximum(p_y1, t_y1)
    br_x = jnp.minimum(p_x2, t_x2)
    br_y = jnp.minimum(p_y2, t_y2)

    area_p = pw * ph
    area_g = tw * th
    en = ((tl_x < br_x) & (tl_y < br_y)).astype(jnp.float32)
    area_i = (br_x - tl_x) * (br_y - tl_y) * en

    iou = area_i / (area_p + area_g - area_i + 1e-16)

    if loss_type == 'iou':
        loss = 1.0 - iou * iou
    elif loss_type == 'giou':
        c_tl_x = jnp.minimum(p_x1, t_x1)
        c_tl_y = jnp.minimum(p_y1, t_y1)
        c_br_x = jnp.maximum(p_x2, t_x2)
        c_br_y = jnp.maximum(p_y2, t_y2)
        area_c = (c_br_x - c_tl_x) * (c_br_y - c_tl_y)
        giou = iou - (area_c - area_i) / jnp.maximum(area_c, 1e-16)
        loss = 1.0 - jnp.clip(giou, -1.0, 1.0)
    else:
        raise ValueError(f"unknown loss_type: {loss_type}")

    o_ref[...] = loss                                    # (R, 128), dense vst


# ----------------------------------------------------------------------------
# Wrapper (matches IOUloss.forward semantics)
# ----------------------------------------------------------------------------

def iou_loss(pred, target, *, reduction='none', loss_type='iou'):
    assert pred.shape[0] == target.shape[0]
    pred = pred.reshape(-1, 4).astype(jnp.float32)
    target = target.reshape(-1, 4).astype(jnp.float32)
    n = pred.shape[0]

    # Lane-dense layout: 8 box components stacked, boxes on (sublane, lane).
    boxes = jnp.concatenate([pred.T, target.T], axis=0)  # (8, N)

    rows_total = pl.cdiv(max(n, 1), _LANE)
    rows_total = pl.cdiv(rows_total, _SUBLANE) * _SUBLANE        # multiple of 8
    tile_rows = min(_MAX_ROWS, rows_total)                       # multiple of 8
    rows_total = pl.cdiv(rows_total, tile_rows) * tile_rows      # mult of tile
    n_pad = rows_total * _LANE

    if n_pad != n:
        boxes = jnp.pad(boxes, ((0, 0), (0, n_pad - n)))
    boxes = boxes.reshape(8, rows_total, _LANE)                  # (8, R, 128)

    out = pl.pallas_call(
        functools.partial(_iou_loss_kernel, loss_type=loss_type),
        out_shape=jax.ShapeDtypeStruct((rows_total, _LANE), jnp.float32),
        grid=(rows_total // tile_rows,),
        in_specs=[pl.BlockSpec((8, tile_rows, _LANE), lambda i: (0, i, 0))],
        out_specs=pl.BlockSpec((tile_rows, _LANE), lambda i: (i, 0)),
        compiler_params=pltpu.CompilerParams(
            dimension_semantics=("parallel",)),
    )(boxes)

    loss = out.reshape(-1)[:n]
    if reduction == 'mean':
        loss = loss.mean()
    elif reduction == 'sum':
        loss = loss.sum()
    return loss


# ----------------------------------------------------------------------------
# Pure-JAX reference (mirrors the PyTorch module) for correctness checking
# ----------------------------------------------------------------------------

def iou_loss_ref(pred, target, reduction='none', loss_type='iou'):
    pred = pred.reshape(-1, 4)
    target = target.reshape(-1, 4)
    tl = jnp.maximum(pred[:, :2] - pred[:, 2:] / 2,
                     target[:, :2] - target[:, 2:] / 2)
    br = jnp.minimum(pred[:, :2] + pred[:, 2:] / 2,
                     target[:, :2] + target[:, 2:] / 2)
    area_p = jnp.prod(pred[:, 2:], axis=1)
    area_g = jnp.prod(target[:, 2:], axis=1)
    en = jnp.prod((tl < br).astype(tl.dtype), axis=1)
    area_i = jnp.prod(br - tl, axis=1) * en
    iou = area_i / (area_p + area_g - area_i + 1e-16)
    if loss_type == 'iou':
        loss = 1.0 - iou ** 2
    elif loss_type == 'giou':
        c_tl = jnp.minimum(pred[:, :2] - pred[:, 2:] / 2,
                           target[:, :2] - target[:, 2:] / 2)
        c_br = jnp.maximum(pred[:, :2] + pred[:, 2:] / 2,
                           target[:, :2] + target[:, 2:] / 2)
        area_c = jnp.prod(c_br - c_tl, axis=1)
        giou = iou - (area_c - area_i) / jnp.maximum(area_c, 1e-16)
        loss = 1.0 - jnp.clip(giou, -1.0, 1.0)
    if reduction == 'mean':
        loss = loss.mean()
    elif reduction == 'sum':
        loss = loss.sum()
    return loss


# ----------------------------------------------------------------------------

if __name__ == "__main__":
    key = jax.random.PRNGKey(0)
    k1, k2, k3, k4 = jax.random.split(key, 4)

    # 2 images x 256 anchors, boxes in (cx, cy, w, h); w,h kept positive.
    B, A = 2, 256
    pred_xy = jax.random.normal(k1, (B, A, 2), jnp.float32) * 4.0
    pred_wh = jnp.abs(jax.random.normal(k2, (B, A, 2), jnp.float32)) * 2.0 + 0.1
    tgt_xy = jax.random.normal(k3, (B, A, 2), jnp.float32) * 4.0
    tgt_wh = jnp.abs(jax.random.normal(k4, (B, A, 2), jnp.float32)) * 2.0 + 0.1
    pred = jnp.concatenate([pred_xy, pred_wh], axis=-1)     # (2, 256, 4)
    target = jnp.concatenate([tgt_xy, tgt_wh], axis=-1)     # (2, 256, 4)

    # Default IOUloss config: reduction='none', loss_type='iou'
    loss = iou_loss(pred, target)
    jax.block_until_ready(loss)
    assert loss.shape == (B * A,)
    ref = iou_loss_ref(pred, target)
    assert bool(jnp.allclose(loss, ref, atol=1e-5, rtol=1e-5))

    # GIoU path
    loss_giou = iou_loss(pred, target, loss_type='giou')
    ref_giou = iou_loss_ref(pred, target, loss_type='giou')
    assert bool(jnp.allclose(loss_giou, ref_giou, atol=1e-5, rtol=1e-5))

    # Reductions (done in plain JAX outside the kernel)
    loss_mean = iou_loss(pred, target, reduction='mean')
    assert bool(jnp.allclose(loss_mean, ref.mean(), atol=1e-5, rtol=1e-5))
    loss_sum = iou_loss(pred, target, reduction='sum', loss_type='giou')
    assert bool(jnp.allclose(loss_sum, ref_giou.sum(), atol=1e-4, rtol=1e-5))

    print("KERNEL_OK")
</pallas_src>

<mosaic_0001>
module attributes {stable_mosaic.version = 11 : i64} {
  func.func @_iou_loss_kernel(%arg0: i32, %arg1: memref<8x8x128xf32, #tpu.memory_space<vmem>>, %arg2: memref<8x128xf32, #tpu.memory_space<vmem>>) attributes {dimension_semantics = [#tpu.dimension_semantics<parallel>], iteration_bounds = array<i64: 1>, scalar_prefetch = 0 : i64, scratch_operands = 0 : i64, tpu.core_type = #tpu.core_type<tc>, window_params = [{transform_indices = @transform_0, window_bounds = array<i64: 8, 8, 128>}, {transform_indices = @transform_1, window_bounds = array<i64: 8, 128>}]} {
    %c0 = arith.constant 0 : index
    %c0_0 = arith.constant 0 : index
    %c0_1 = arith.constant 0 : index
    %0 = vector.load %arg1[%c0, %c0_0, %c0_1] : memref<8x8x128xf32, #tpu.memory_space<vmem>>, vector<8x8x128xf32>
    %1 = vector.extract_strided_slice %0 {offsets = [0, 0, 0], sizes = [1, 8, 128], strides = [1, 1, 1]} : vector<8x8x128xf32> to vector<1x8x128xf32>
    %2 = vector.shape_cast %1 : vector<1x8x128xf32> to vector<8x128xf32>
    %3 = vector.extract_strided_slice %0 {offsets = [1, 0, 0], sizes = [1, 8, 128], strides = [1, 1, 1]} : vector<8x8x128xf32> to vector<1x8x128xf32>
    %4 = vector.shape_cast %3 : vector<1x8x128xf32> to vector<8x128xf32>
    %5 = vector.extract_strided_slice %0 {offsets = [2, 0, 0], sizes = [1, 8, 128], strides = [1, 1, 1]} : vector<8x8x128xf32> to vector<1x8x128xf32>
    %6 = vector.shape_cast %5 : vector<1x8x128xf32> to vector<8x128xf32>
    %7 = vector.extract_strided_slice %0 {offsets = [3, 0, 0], sizes = [1, 8, 128], strides = [1, 1, 1]} : vector<8x8x128xf32> to vector<1x8x128xf32>
    %8 = vector.shape_cast %7 : vector<1x8x128xf32> to vector<8x128xf32>
    %9 = vector.extract_strided_slice %0 {offsets = [4, 0, 0], sizes = [1, 8, 128], strides = [1, 1, 1]} : vector<8x8x128xf32> to vector<1x8x128xf32>
    %10 = vector.shape_cast %9 : vector<1x8x128xf32> to vector<8x128xf32>
    %11 = vector.extract_strided_slice %0 {offsets = [5, 0, 0], sizes = [1, 8, 128], strides = [1, 1, 1]} : vector<8x8x128xf32> to vector<1x8x128xf32>
    %12 = vector.shape_cast %11 : vector<1x8x128xf32> to vector<8x128xf32>
    %13 = vector.extract_strided_slice %0 {offsets = [6, 0, 0], sizes = [1, 8, 128], strides = [1, 1, 1]} : vector<8x8x128xf32> to vector<1x8x128xf32>
    %14 = vector.shape_cast %13 : vector<1x8x128xf32> to vector<8x128xf32>
    %15 = vector.extract_strided_slice %0 {offsets = [7, 0, 0], sizes = [1, 8, 128], strides = [1, 1, 1]} : vector<8x8x128xf32> to vector<1x8x128xf32>
    %16 = vector.shape_cast %15 : vector<1x8x128xf32> to vector<8x128xf32>
    %cst = arith.constant 5.000000e-01 : f32
    %17 = vector.broadcast %cst : f32 to vector<8x128xf32>
    %18 = arith.mulf %17, %6 : vector<8x128xf32>
    %cst_2 = arith.constant 5.000000e-01 : f32
    %19 = vector.broadcast %cst_2 : f32 to vector<8x128xf32>
    %20 = arith.mulf %19, %8 : vector<8x128xf32>
    %cst_3 = arith.constant 5.000000e-01 : f32
    %21 = vector.broadcast %cst_3 : f32 to vector<8x128xf32>
    %22 = arith.mulf %21, %14 : vector<8x128xf32>
    %cst_4 = arith.constant 5.000000e-01 : f32
    %23 = vector.broadcast %cst_4 : f32 to vector<8x128xf32>
    %24 = arith.mulf %23, %16 : vector<8x128xf32>
    %25 = arith.subf %2, %18 : vector<8x128xf32>
    %26 = arith.subf %4, %20 : vector<8x128xf32>
    %27 = arith.addf %2, %18 : vector<8x128xf32>
    %28 = arith.addf %4, %20 : vector<8x128xf32>
    %29 = arith.subf %10, %22 : vector<8x128xf32>
    %30 = arith.subf %12, %24 : vector<8x128xf32>
    %31 = arith.addf %10, %22 : vector<8x128xf32>
    %32 = arith.addf %12, %24 : vector<8x128xf32>
    %33 = arith.maximumf %25, %29 : vector<8x128xf32>
    %34 = arith.maximumf %26, %30 : vector<8x128xf32>
    %35 = arith.minimumf %27, %31 : vector<8x128xf32>
    %36 = arith.minimumf %28, %32 : vector<8x128xf32>
    %37 = arith.mulf %6, %8 : vector<8x128xf32>
    %38 = arith.mulf %14, %16 : vector<8x128xf32>
    %39 = arith.cmpf olt, %33, %35 : vector<8x128xf32>
    %40 = arith.cmpf olt, %34, %36 : vector<8x128xf32>
    %41 = arith.andi %39, %40 : vector<8x128xi1>
    %42 = arith.extui %41 : vector<8x128xi1> to vector<8x128xi32>
    %43 = arith.sitofp %42 : vector<8x128xi32> to vector<8x128xf32>
    %44 = arith.subf %35, %33 : vector<8x128xf32>
    %45 = arith.subf %36, %34 : vector<8x128xf32>
    %46 = arith.mulf %44, %45 : vector<8x128xf32>
    %47 = arith.mulf %46, %43 : vector<8x128xf32>
    %48 = arith.addf %37, %38 : vector<8x128xf32>
    %49 = arith.subf %48, %47 : vector<8x128xf32>
    %cst_5 = arith.constant 1.000000e-16 : f32
    %50 = vector.broadcast %cst_5 : f32 to vector<8x128xf32>
    %51 = arith.addf %49, %50 : vector<8x128xf32>
    %52 = arith.divf %47, %51 : vector<8x128xf32>
    %53 = arith.mulf %52, %52 : vector<8x128xf32>
    %cst_6 = arith.constant 1.000000e+00 : f32
    %54 = vector.broadcast %cst_6 : f32 to vector<8x128xf32>
    %55 = arith.subf %54, %53 : vector<8x128xf32>
    %c0_7 = arith.constant 0 : index
    %c0_8 = arith.constant 0 : index
    %56 = vector.load %arg2[%c0_7, %c0_8] : memref<8x128xf32, #tpu.memory_space<vmem>>, vector<8x128xf32>
    tpu.vector_store %arg2[%c0_7, %c0_8], %55 {strides = array<i32>} : memref<8x128xf32, #tpu.memory_space<vmem>>, vector<8x128xf32>,
    return
  }
  func.func @transform_0(%arg0: i32) -> (i32, i32, i32) {
    %c0_i32 = arith.constant 0 : i32
    %c0_i32_0 = arith.constant 0 : i32
    %c0_i32_1 = arith.constant 0 : i32
    return %c0_i32, %arg0, %c0_i32_0 : i32, i32, i32
  }
  func.func @transform_1(%arg0: i32) -> (i32, i32) {
    %c0_i32 = arith.constant 0 : i32
    %c0_i32_0 = arith.constant 0 : i32
    return %arg0, %c0_i32 : i32, i32
  }
}

</mosaic_0001>

<llo_original>
// kernel: tpu_custom_call.1
$region0: #{tpu_custom_call.1}
  #allocation0 [shape = 'u32[]', space=smem, size = 0x4, offset = 0x4, fixed_abs, tag = 'smem constant byte address 0x4 - core index']
  #allocation1 [shape = 'u32[72,128]{1,0:T(1,128)}', space=vmem, size = 0x9000, scoped, tag = 'internal scratch']
  %s0 = inlined_call_operand.hbm [shape: f32[8,8,128], index: 0, kind: input, shape index: {}]
  %s1 = inlined_call_operand.hbm [shape: f32[8,128], index: 1, kind: output, shape index: {}]
  %s2 = sld [smem:[#allocation0]]
  $region18: #{tpu_custom_call.1} parent=0
    _
  %s4 = ssub.s32 1, %s2
  %s5 = scalar_select 0, %s4, %s2
  $region1: #{tpu_custom_call.1} parent=0
    #allocation2 [shape = 'u8[32768]{0}', space=vmem, size = 0x8000, scoped, tag = 'input window, operand 0, single buffered']
    #allocation3 [shape = 's32[1]{0}', space=sflag, size = 0x4, scoped, tag = 'scoped memory for tpu_custom_call.1']
    #allocation4 [shape = 's32[1]{0}', space=sflag, size = 0x4, scoped, tag = 'scoped memory for tpu_custom_call.1']
    #allocation5 [shape = 'u8[4096]{0}', space=vmem, size = 0x1000, scoped, tag = 'output window, operand 0, single buffered']
    %6 = vsyncpa [#allocation3], 0
    %7 = vsyncpa [#allocation4], 0
    // Predicated region
    $region2: #{tpu_custom_call.1} parent=1 // pred_check
      _
    $region3: #{tpu_custom_call.1} parent=1 // pred_check_branch
      %9 = sbr.rel (0) target = $region5
    $region4: #{tpu_custom_call.1} parent=1 // pred_region
      %11 = vsyncadd [#allocation3], 0
      %s12 = sshll.u32 %s0, 4
      %s13 = int_to_ptr.hbm [resolvable:$true] %s12
      %s14 = sshll.u32 [#allocation2], 4
      %s15 = int_to_ptr.vmem [resolvable:$true] %s14
      %20 = dma.hbm_to_vmem [thread:$0]  %s13, 1024, %s15, [#allocation3], 128, 128, 8
    $region5: #{tpu_custom_call.1} parent=1 // pred_fallthru
      _
    // Predicated region
    $region6: #{tpu_custom_call.1} parent=1 // pred_check
      _
    $region7: #{tpu_custom_call.1} parent=1 // pred_check_branch
      %22 = sbr.rel (0) target = $region9
    $region8: #{tpu_custom_call.1} parent=1 // pred_region
      %24 = dma.done [#allocation3], 1024
    $region9: #{tpu_custom_call.1} parent=1 // pred_fallthru
      _
    %v25 = vld [vmem:[#allocation2] sm:$0xff]
    %v26 = vld [vmem:[#allocation2 + $0x8] sm:$0xff]
    %v27 = vld [vmem:[#allocation2 + $0x10] sm:$0xff]
    %v28 = vld [vmem:[#allocation2 + $0x18] sm:$0xff]
    %v29 = vld [vmem:[#allocation2 + $0x20] sm:$0xff]
    %v30 = vld [vmem:[#allocation2 + $0x28] sm:$0xff]
    %v31 = vld [vmem:[#allocation2 + $0x30] sm:$0xff]
    %v32 = vld [vmem:[#allocation2 + $0x38] sm:$0xff]
    %v33 = vmul.f32 %v27, 0.5
    %v34 = vmul.f32 %v28, 0.5
    %v35 = vmul.f32 %v31, 0.5
    %v36 = vmul.f32 %v32, 0.5
    %v37 = vsub.f32 %v25, %v33
    %v38 = vsub.f32 %v26, %v34
    %v39 = vadd.f32 %v25, %v33
    %v40 = vadd.f32 %v26, %v34
    %v41 = vsub.f32 %v29, %v35
    %v42 = vsub.f32 %v30, %v36
    %v43 = vadd.f32 %v29, %v35
    %v44 = vadd.f32 %v30, %v36
    %v45 = vmax.f32 %v37, %v41
    %v46 = vmax.f32 %v38, %v42
    %v47 = vmin.f32 %v39, %v43
    %v48 = vmin.f32 %v40, %v44
    %v49 = vmul.f32 %v27, %v28
    %v50 = vmul.f32 %v31, %v32
    %vm51 = vcmp.lt.f32.partialorder %v45, %v47
    %vm52 = vcmp.lt.f32.partialorder %v46, %v48
    %vm53 = vmand %vm51, %vm52
    %v54 = vsel %vm53, 1, 0
    %v55 = vcvt.s32.f32 %v54
    %v56 = vsub.f32 %v47, %v45
    %v57 = vsub.f32 %v48, %v46
    %v58 = vmul.f32 %v56, %v57
    %v59 = vmul.f32 %v58, %v55
    %v60 = vadd.f32 %v49, %v50
    %v61 = vsub.f32 %v60, %v59
    %v62 = vadd.f32 %v61, 1e-16
    %v63 = vrcp.pop %v62
    %v64 = vmul.f32 %v62, %v63
    %v65 = vsub.f32 1.0, %v64
    %v66 = vmul.f32 %v63, %v65
    %v67 = vadd.f32 %v63, %v66
    %vm68 = vweird.f32 %v62
    %vm69 = vweird.f32 %v63
    %vm70 = vmor %vm68, %vm69
    %v71 = vsel %vm70, %v63, %v67
    %v72 = vand.u32 2147483647, %v62
    %vm73 = vcmp.eq.f32.partialorder %v72, 8.507059e+37
    %v74 = vand.u32 %v62, 2147483648
    %v75 = vor.u32 1.1754944e-38, %v74
    %v76 = vsel %vm73, %v75, %v71
    %v77 = vmul.f32 %v59, %v76
    %v78 = vmul.f32 %v77, %v77
    %v79 = vsub.f32 1.0, %v78
    %80 = vst [vmem:[#allocation5] sm:$0xff] %v79
    // Predicated region
    $region10: #{tpu_custom_call.1} parent=1 // pred_check
      _
    $region11: #{tpu_custom_call.1} parent=1 // pred_check_branch
      %82 = sbr.rel (0) target = $region13
    $region12: #{tpu_custom_call.1} parent=1 // pred_region
      %84 = vsyncadd [#allocation4], 0
      %s86 = sshll.u32 [#allocation5], 4
      %s87 = int_to_ptr.vmem [resolvable:$true] %s86
      %s88 = sshll.u32 %s1, 4
      %s89 = int_to_ptr.hbm [resolvable:$true] %s88
      %91 = dma.vmem_to_hbm [thread:$0]  %s87, 128, %s89, [#allocation4]
    $region13: #{tpu_custom_call.1} parent=1 // pred_fallthru
      _
    // Predicated region
    $region14: #{tpu_custom_call.1} parent=1 // pred_check
      _
    $region15: #{tpu_custom_call.1} parent=1 // pred_check_branch
      %93 = sbr.rel (0) target = $region17
    $region16: #{tpu_custom_call.1} parent=1 // pred_region
      %95 = dma.done [#allocation4], 128
    $region17: #{tpu_custom_call.1} parent=1 // pred_fallthru
      _
    %96 = vsyncpa [#allocation3], 1
    %97 = vsyncpa [#allocation4], 1

</llo_original>
